<compile_context>
chip_gen: v5e
topology: v5e:2x2
jax: 0.10.0
libtpu: 0.0.40
codegen_flags: <defaults>
</compile_context>

<pallas_src>
import jax
import jax.numpy as jnp
from jax.experimental import pallas as pl
from jax.experimental.pallas import tpu as pltpu

LANE = 128     # TPU vreg lane width; the 4 packed gates fill exactly one tile.
SUBLANE = 8    # f32 sublane tile; batch is padded to this.


def _residual_lstm_kernel(x_ref, w_ih_ref, w_hh_ref, fc_ref, out_ref):
    """Full LSTM recurrence + final Linear for one batch tile, all in VMEM.

    x_ref    : [T, BT, D+1]  time-major input, last column is all-ones (fused bias)
    w_ih_ref : [D+1, 4H]     input->gate weights, last row = b_ih + b_hh,
                             gate order packed as (i, f, o, g)
    w_hh_ref : [H, 4H]       hidden->gate weights, same packed gate order
    fc_ref   : [1, 4H]       lanes [0:H] = FC weight row, lane [H] = FC bias
    out_ref  : [BT, 1]       output
    """
    T, BT, D1 = x_ref.shape
    H, G = w_hh_ref.shape          # G == 4*H == 128 (one lane tile)

    x = x_ref[...]                 # [T, BT, D1]
    w_ih = w_ih_ref[...]           # [D1, G]

    # ---- Hoisted input projection (incl. fused bias) for every timestep. ----
    # K = D+1 = 5 is far too small to pay an MXU fill/drain at the head of the
    # serial chain, so do it as D+1 VPU broadcast FMAs.
    xg = x[:, :, 0:1] * w_ih[0:1, :]                    # [T, BT, G]
    for d in range(1, D1):
        xg = xg + x[:, :, d:d + 1] * w_ih[d:d + 1, :]

    w_hh = w_hh_ref[...]                                # [H, G]
    h = jnp.zeros((BT, H), jnp.float32)
    c = jnp.zeros((BT, H), jnp.float32)

    # Packed gate order is (i, f, o, g): the tanh-gate g sits in the last H
    # lanes, so one whole-vreg sigmoid + one whole-vreg tanh + a lane select
    # replace 3 sigmoid + 1 tanh per step on the single-EUP-slot path.
    lane = jax.lax.broadcasted_iota(jnp.int32, (BT, G), 1)
    is_g = lane >= 3 * H                                # hoisted out of the loop

    # Fully-unrolled recurrence: T is small & static, live state is a few
    # vregs, and static slices let the scheduler interleave adjacent steps.
    for t in range(T):
        gates = xg[t] + jnp.dot(h, w_hh, preferred_element_type=jnp.float32)
        sig = jax.nn.sigmoid(gates)                     # 1 EUP pass (packed)
        th = jnp.tanh(gates)                            # 1 EUP pass (packed)
        acts = jnp.where(is_g, th, sig)                 # [BT, G] = i|f|o|g
        i = acts[:, 0 * H:1 * H]
        f = acts[:, 1 * H:2 * H]
        o = acts[:, 2 * H:3 * H]
        g = acts[:, 3 * H:4 * H]
        c = f * c + i * g
        h = o * jnp.tanh(c)

    # Dropout is identity at inference time (module eval semantics).
    # TODO(synk): training-mode dropout (p=0.2) with pltpu PRNG not implemented.
    # NOTE: despite its name, the PyTorch ResidualLSTM adds no residual path.
    # Final Linear (output_dim == 1): VPU multiply + lane reduction instead of
    # a 1-lane-wide MXU matmul; FC weight and bias ride in one packed row.
    fc = fc_ref[...]                                    # [1, G]
    y = jnp.sum(h * fc[:, 0:H], axis=-1, keepdims=True) + fc[:, H:H + 1]
    out_ref[...] = y


def pack_params(w_ih_t, w_hh_t, b_ih, b_hh, w_fc_t, b_fc):
    """Convert PyTorch-layout LSTM/Linear params to the kernel's packed layout."""
    four_h, _ = w_ih_t.shape
    H = four_h // 4
    O = w_fc_t.shape[0]
    if O != 1:
        raise NotImplementedError("kernel head assumes output_dim == 1")
    if (4 * H) % LANE != 0:
        raise NotImplementedError("packed-gate layout needs 4*hidden_dim % 128 == 0")

    def reorder(a):
        # Leading 4H axis: PyTorch gate order (i, f, g, o) -> packed (i, f, o, g)
        # so the tanh gate g occupies the last H lanes.
        return jnp.concatenate(
            [a[0:H], a[H:2 * H], a[3 * H:4 * H], a[2 * H:3 * H]], axis=0)

    w_ih = reorder(w_ih_t).T.astype(jnp.float32)              # [D, 4H]
    b = reorder(b_ih + b_hh)[None, :].astype(jnp.float32)     # [1, 4H]
    w_ih_aug = jnp.concatenate([w_ih, b], axis=0)             # [D+1, 4H] (bias row)
    w_hh = reorder(w_hh_t).T.astype(jnp.float32)              # [H, 4H]

    fc = jnp.zeros((1, 4 * H), jnp.float32)
    fc = fc.at[0, :H].set(w_fc_t[0].astype(jnp.float32))      # FC weight in lanes [0:H]
    fc = fc.at[0, H].set(b_fc[0].astype(jnp.float32))         # FC bias in lane [H]

    return {"w_ih": w_ih_aug, "w_hh": w_hh, "fc": fc}


def residual_lstm_forward(x, params):
    """x: [B, T, D] batch_first (PyTorch convention). Returns [B, 1]."""
    B, T, D = x.shape
    H, G = params["w_hh"].shape
    D1 = params["w_ih"].shape[0]              # D + 1 (ones column for fused bias)

    # Pad batch to the f32 sublane tile so every per-step vreg op is whole-tile
    # and the final store is sublane-complete.  Padded rows never mix with real
    # rows (all state math is row-wise) and are sliced off below.
    BP = ((B + SUBLANE - 1) // SUBLANE) * SUBLANE
    BT = SUBLANE  # batch tile per grid step; "parallel" axis shards TCs on v7x

    xp = jnp.pad(x.astype(jnp.float32), ((0, BP - B), (0, 0), (0, 0)))
    x_tm = jnp.transpose(xp, (1, 0, 2))                       # [T, BP, D] time-major
    x_aug = jnp.concatenate(
        [x_tm, jnp.ones((T, BP, 1), jnp.float32)], axis=-1)   # [T, BP, D+1]

    out = pl.pallas_call(
        _residual_lstm_kernel,
        out_shape=jax.ShapeDtypeStruct((BP, 1), jnp.float32),
        grid_spec=pltpu.PrefetchScalarGridSpec(
            num_scalar_prefetch=0,
            grid=(BP // BT,),
            in_specs=[
                pl.BlockSpec((T, BT, D1), lambda b: (0, b, 0)),
                pl.BlockSpec((D1, G), lambda b: (0, 0)),
                pl.BlockSpec((H, G), lambda b: (0, 0)),
                pl.BlockSpec((1, G), lambda b: (0, 0)),
            ],
            out_specs=pl.BlockSpec((BT, 1), lambda b: (b, 0)),
        ),
        compiler_params=pltpu.CompilerParams(
            dimension_semantics=("parallel",),
            vmem_limit_bytes=32 * 1024 * 1024,
        ),
    )(x_aug, params["w_ih"], params["w_hh"], params["fc"])
    return out[:B]


def _reference_forward(x, w_ih_t, w_hh_t, b_ih, b_hh, w_fc_t, b_fc):
    """Pure-JAX mirror of torch.nn.LSTM(batch_first) + Linear (eval mode)."""
    B, T, D = x.shape
    H = w_hh_t.shape[1]
    w_ih = w_ih_t.T
    w_hh = w_hh_t.T
    b = (b_ih + b_hh)[None, :]
    h = jnp.zeros((B, H), jnp.float32)
    c = jnp.zeros((B, H), jnp.float32)
    for t in range(T):
        gates = x[:, t, :] @ w_ih + h @ w_hh + b
        i = jax.nn.sigmoid(gates[:, 0 * H:1 * H])
        f = jax.nn.sigmoid(gates[:, 1 * H:2 * H])
        g = jnp.tanh(gates[:, 2 * H:3 * H])
        o = jax.nn.sigmoid(gates[:, 3 * H:4 * H])
        c = f * c + i * g
        h = o * jnp.tanh(c)
    return h @ w_fc_t.T + b_fc[None, :]


if __name__ == "__main__":
    # batch=2, seq=8, input_dim=4, hidden_dim=32, output_dim=1
    B, T, D, H, O = 2, 8, 4, 32, 1

    key = jax.random.PRNGKey(0)
    ks = jax.random.split(key, 7)
    bound = 1.0 / jnp.sqrt(jnp.float32(H))

    # Deterministic init in PyTorch parameter layouts.
    w_ih_t = jax.random.uniform(ks[0], (4 * H, D), jnp.float32, -bound, bound)
    w_hh_t = jax.random.uniform(ks[1], (4 * H, H), jnp.float32, -bound, bound)
    b_ih = jax.random.uniform(ks[2], (4 * H,), jnp.float32, -bound, bound)
    b_hh = jax.random.uniform(ks[3], (4 * H,), jnp.float32, -bound, bound)
    w_fc_t = jax.random.uniform(ks[4], (O, H), jnp.float32, -bound, bound)
    b_fc = jax.random.uniform(ks[5], (O,), jnp.float32, -bound, bound)

    x = jax.random.normal(ks[6], (B, T, D), jnp.float32)

    params = pack_params(w_ih_t, w_hh_t, b_ih, b_hh, w_fc_t, b_fc)

    out = jax.block_until_ready(residual_lstm_forward(x, params))
    ref = jax.block_until_ready(
        _reference_forward(x, w_ih_t, w_hh_t, b_ih, b_hh, w_fc_t, b_fc))

    assert out.shape == (B, O), out.shape
    assert jnp.allclose(out, ref, atol=1e-5, rtol=1e-5), (out, ref)
    print("KERNEL_OK")
</pallas_src>

<mosaic_0001>
module attributes {stable_mosaic.version = 11 : i64} {
  func.func @_residual_lstm_kernel(%arg0: i32, %arg1: memref<8x8x5xf32, #tpu.memory_space<vmem>>, %arg2: memref<5x128xf32, #tpu.memory_space<vmem>>, %arg3: memref<32x128xf32, #tpu.memory_space<vmem>>, %arg4: memref<1x128xf32, #tpu.memory_space<vmem>>, %arg5: memref<8x1xf32, #tpu.memory_space<vmem>>) attributes {dimension_semantics = [#tpu.dimension_semantics<parallel>], iteration_bounds = array<i64: 1>, scalar_prefetch = 0 : i64, scratch_operands = 0 : i64, tpu.core_type = #tpu.core_type<tc>, window_params = [{transform_indices = @transform_0, window_bounds = array<i64: 8, 8, 5>}, {pipeline_mode = #tpu.pipeline_mode<synchronous>, transform_indices = @transform_1, window_bounds = array<i64: 5, 128>}, {pipeline_mode = #tpu.pipeline_mode<synchronous>, transform_indices = @transform_2, window_bounds = array<i64: 32, 128>}, {pipeline_mode = #tpu.pipeline_mode<synchronous>, transform_indices = @transform_3, window_bounds = array<i64: 1, 128>}, {transform_indices = @transform_4, window_bounds = array<i64: 8, 1>}]} {
    %c0 = arith.constant 0 : index
    %c0_0 = arith.constant 0 : index
    %c0_1 = arith.constant 0 : index
    %0 = vector.load %arg1[%c0, %c0_0, %c0_1] : memref<8x8x5xf32, #tpu.memory_space<vmem>>, vector<8x8x5xf32>
    %c0_2 = arith.constant 0 : index
    %c0_3 = arith.constant 0 : index
    %1 = vector.load %arg2[%c0_2, %c0_3] : memref<5x128xf32, #tpu.memory_space<vmem>>, vector<5x128xf32>
    %2 = vector.extract_strided_slice %0 {offsets = [0, 0, 0], sizes = [8, 8, 1], strides = [1, 1, 1]} : vector<8x8x5xf32> to vector<8x8x1xf32>
    %3 = vector.extract_strided_slice %1 {offsets = [0, 0], sizes = [1, 128], strides = [1, 1]} : vector<5x128xf32> to vector<1x128xf32>
    %4 = vector.shape_cast %3 : vector<1x128xf32> to vector<1x1x128xf32>
    %5 = vector.broadcast %2 : vector<8x8x1xf32> to vector<8x8x128xf32>
    %6 = vector.broadcast %4 : vector<1x1x128xf32> to vector<8x8x128xf32>
    %7 = arith.mulf %5, %6 : vector<8x8x128xf32>
    %8 = vector.extract_strided_slice %0 {offsets = [0, 0, 1], sizes = [8, 8, 1], strides = [1, 1, 1]} : vector<8x8x5xf32> to vector<8x8x1xf32>
    %9 = vector.extract_strided_slice %1 {offsets = [1, 0], sizes = [1, 128], strides = [1, 1]} : vector<5x128xf32> to vector<1x128xf32>
    %10 = vector.shape_cast %9 : vector<1x128xf32> to vector<1x1x128xf32>
    %11 = vector.broadcast %8 : vector<8x8x1xf32> to vector<8x8x128xf32>
    %12 = vector.broadcast %10 : vector<1x1x128xf32> to vector<8x8x128xf32>
    %13 = arith.mulf %11, %12 : vector<8x8x128xf32>
    %14 = arith.addf %7, %13 : vector<8x8x128xf32>
    %15 = vector.extract_strided_slice %0 {offsets = [0, 0, 2], sizes = [8, 8, 1], strides = [1, 1, 1]} : vector<8x8x5xf32> to vector<8x8x1xf32>
    %16 = vector.extract_strided_slice %1 {offsets = [2, 0], sizes = [1, 128], strides = [1, 1]} : vector<5x128xf32> to vector<1x128xf32>
    %17 = vector.shape_cast %16 : vector<1x128xf32> to vector<1x1x128xf32>
    %18 = vector.broadcast %15 : vector<8x8x1xf32> to vector<8x8x128xf32>
    %19 = vector.broadcast %17 : vector<1x1x128xf32> to vector<8x8x128xf32>
    %20 = arith.mulf %18, %19 : vector<8x8x128xf32>
    %21 = arith.addf %14, %20 : vector<8x8x128xf32>
    %22 = vector.extract_strided_slice %0 {offsets = [0, 0, 3], sizes = [8, 8, 1], strides = [1, 1, 1]} : vector<8x8x5xf32> to vector<8x8x1xf32>
    %23 = vector.extract_strided_slice %1 {offsets = [3, 0], sizes = [1, 128], strides = [1, 1]} : vector<5x128xf32> to vector<1x128xf32>
    %24 = vector.shape_cast %23 : vector<1x128xf32> to vector<1x1x128xf32>
    %25 = vector.broadcast %22 : vector<8x8x1xf32> to vector<8x8x128xf32>
    %26 = vector.broadcast %24 : vector<1x1x128xf32> to vector<8x8x128xf32>
    %27 = arith.mulf %25, %26 : vector<8x8x128xf32>
    %28 = arith.addf %21, %27 : vector<8x8x128xf32>
    %29 = vector.extract_strided_slice %0 {offsets = [0, 0, 4], sizes = [8, 8, 1], strides = [1, 1, 1]} : vector<8x8x5xf32> to vector<8x8x1xf32>
    %30 = vector.extract_strided_slice %1 {offsets = [4, 0], sizes = [1, 128], strides = [1, 1]} : vector<5x128xf32> to vector<1x128xf32>
    %31 = vector.shape_cast %30 : vector<1x128xf32> to vector<1x1x128xf32>
    %32 = vector.broadcast %29 : vector<8x8x1xf32> to vector<8x8x128xf32>
    %33 = vector.broadcast %31 : vector<1x1x128xf32> to vector<8x8x128xf32>
    %34 = arith.mulf %32, %33 : vector<8x8x128xf32>
    %35 = arith.addf %28, %34 : vector<8x8x128xf32>
    %c0_4 = arith.constant 0 : index
    %c0_5 = arith.constant 0 : index
    %36 = vector.load %arg3[%c0_4, %c0_5] : memref<32x128xf32, #tpu.memory_space<vmem>>, vector<32x128xf32>
    %cst = arith.constant 0.000000e+00 : f32
    %37 = vector.broadcast %cst : f32 to vector<8x32xf32>
    %cst_6 = arith.constant 0.000000e+00 : f32
    %38 = vector.broadcast %cst_6 : f32 to vector<8x32xf32>
    %39 = tpu.iota {dimensions = array<i32: 1>} : vector<8x128xi32>
    %c96_i32 = arith.constant 96 : i32
    %40 = vector.broadcast %c96_i32 : i32 to vector<8x128xi32>
    %41 = arith.cmpi sge, %39, %40 : vector<8x128xi32>
    %42 = vector.extract_strided_slice %35 {offsets = [0, 0, 0], sizes = [1, 8, 128], strides = [1, 1, 1]} : vector<8x8x128xf32> to vector<1x8x128xf32>
    %43 = vector.shape_cast %42 : vector<1x8x128xf32> to vector<8x128xf32>
    %cst_7 = arith.constant dense<0.000000e+00> : vector<8x128xf32>
    %44 = tpu.matmul %37, %36, %cst_7 {dimension_numbers = #tpu.dot_dimension_numbers<[1], [0], [0], [1], [0, 0, 1, 1], [], []>} : vector<8x32xf32>, vector<32x128xf32>, vector<8x128xf32> -> vector<8x128xf32>
    %45 = arith.addf %43, %44 : vector<8x128xf32>
    %46 = arith.negf %45 : vector<8x128xf32>
    %47 = math.exp %46 : vector<8x128xf32>
    %cst_8 = arith.constant 1.000000e+00 : f32
    %48 = vector.broadcast %cst_8 : f32 to vector<8x128xf32>
    %49 = arith.addf %48, %47 : vector<8x128xf32>
    %50 = arith.divf %48, %49 : vector<8x128xf32>
    %51 = math.tanh %45 : vector<8x128xf32>
    %52 = arith.select %41, %51, %50 : vector<8x128xi1>, vector<8x128xf32>
    %53 = vector.extract_strided_slice %52 {offsets = [0, 0], sizes = [8, 32], strides = [1, 1]} : vector<8x128xf32> to vector<8x32xf32>
    %54 = vector.extract_strided_slice %52 {offsets = [0, 32], sizes = [8, 32], strides = [1, 1]} : vector<8x128xf32> to vector<8x32xf32>
    %55 = vector.extract_strided_slice %52 {offsets = [0, 64], sizes = [8, 32], strides = [1, 1]} : vector<8x128xf32> to vector<8x32xf32>
    %56 = vector.extract_strided_slice %52 {offsets = [0, 96], sizes = [8, 32], strides = [1, 1]} : vector<8x128xf32> to vector<8x32xf32>
    %57 = arith.mulf %54, %38 : vector<8x32xf32>
    %58 = arith.mulf %53, %56 : vector<8x32xf32>
    %59 = arith.addf %57, %58 : vector<8x32xf32>
    %60 = math.tanh %59 : vector<8x32xf32>
    %61 = arith.mulf %55, %60 : vector<8x32xf32>
    %62 = vector.extract_strided_slice %35 {offsets = [1, 0, 0], sizes = [1, 8, 128], strides = [1, 1, 1]} : vector<8x8x128xf32> to vector<1x8x128xf32>
    %63 = vector.shape_cast %62 : vector<1x8x128xf32> to vector<8x128xf32>
    %cst_9 = arith.constant dense<0.000000e+00> : vector<8x128xf32>
    %64 = tpu.matmul %61, %36, %cst_9 {dimension_numbers = #tpu.dot_dimension_numbers<[1], [0], [0], [1], [0, 0, 1, 1], [], []>} : vector<8x32xf32>, vector<32x128xf32>, vector<8x128xf32> -> vector<8x128xf32>
    %65 = arith.addf %63, %64 : vector<8x128xf32>
    %66 = arith.negf %65 : vector<8x128xf32>
    %67 = math.exp %66 : vector<8x128xf32>
    %cst_10 = arith.constant 1.000000e+00 : f32
    %68 = vector.broadcast %cst_10 : f32 to vector<8x128xf32>
    %69 = arith.addf %68, %67 : vector<8x128xf32>
    %70 = arith.divf %68, %69 : vector<8x128xf32>
    %71 = math.tanh %65 : vector<8x128xf32>
    %72 = arith.select %41, %71, %70 : vector<8x128xi1>, vector<8x128xf32>
    %73 = vector.extract_strided_slice %72 {offsets = [0, 0], sizes = [8, 32], strides = [1, 1]} : vector<8x128xf32> to vector<8x32xf32>
    %74 = vector.extract_strided_slice %72 {offsets = [0, 32], sizes = [8, 32], strides = [1, 1]} : vector<8x128xf32> to vector<8x32xf32>
    %75 = vector.extract_strided_slice %72 {offsets = [0, 64], sizes = [8, 32], strides = [1, 1]} : vector<8x128xf32> to vector<8x32xf32>
    %76 = vector.extract_strided_slice %72 {offsets = [0, 96], sizes = [8, 32], strides = [1, 1]} : vector<8x128xf32> to vector<8x32xf32>
    %77 = arith.mulf %74, %59 : vector<8x32xf32>
    %78 = arith.mulf %73, %76 : vector<8x32xf32>
    %79 = arith.addf %77, %78 : vector<8x32xf32>
    %80 = math.tanh %79 : vector<8x32xf32>
    %81 = arith.mulf %75, %80 : vector<8x32xf32>
    %82 = vector.extract_strided_slice %35 {offsets = [2, 0, 0], sizes = [1, 8, 128], strides = [1, 1, 1]} : vector<8x8x128xf32> to vector<1x8x128xf32>
    %83 = vector.shape_cast %82 : vector<1x8x128xf32> to vector<8x128xf32>
    %cst_11 = arith.constant dense<0.000000e+00> : vector<8x128xf32>
    %84 = tpu.matmul %81, %36, %cst_11 {dimension_numbers = #tpu.dot_dimension_numbers<[1], [0], [0], [1], [0, 0, 1, 1], [], []>} : vector<8x32xf32>, vector<32x128xf32>, vector<8x128xf32> -> vector<8x128xf32>
    %85 = arith.addf %83, %84 : vector<8x128xf32>
    %86 = arith.negf %85 : vector<8x128xf32>
    %87 = math.exp %86 : vector<8x128xf32>
    %cst_12 = arith.constant 1.000000e+00 : f32
    %88 = vector.broadcast %cst_12 : f32 to vector<8x128xf32>
    %89 = arith.addf %88, %87 : vector<8x128xf32>
    %90 = arith.divf %88, %89 : vector<8x128xf32>
    %91 = math.tanh %85 : vector<8x128xf32>
    %92 = arith.select %41, %91, %90 : vector<8x128xi1>, vector<8x128xf32>
    %93 = vector.extract_strided_slice %92 {offsets = [0, 0], sizes = [8, 32], strides = [1, 1]} : vector<8x128xf32> to vector<8x32xf32>
    %94 = vector.extract_strided_slice %92 {offsets = [0, 32], sizes = [8, 32], strides = [1, 1]} : vector<8x128xf32> to vector<8x32xf32>
    %95 = vector.extract_strided_slice %92 {offsets = [0, 64], sizes = [8, 32], strides = [1, 1]} : vector<8x128xf32> to vector<8x32xf32>
    %96 = vector.extract_strided_slice %92 {offsets = [0, 96], sizes = [8, 32], strides = [1, 1]} : vector<8x128xf32> to vector<8x32xf32>
    %97 = arith.mulf %94, %79 : vector<8x32xf32>
    %98 = arith.mulf %93, %96 : vector<8x32xf32>
    %99 = arith.addf %97, %98 : vector<8x32xf32>
    %100 = math.tanh %99 : vector<8x32xf32>
    %101 = arith.mulf %95, %100 : vector<8x32xf32>
    %102 = vector.extract_strided_slice %35 {offsets = [3, 0, 0], sizes = [1, 8, 128], strides = [1, 1, 1]} : vector<8x8x128xf32> to vector<1x8x128xf32>
    %103 = vector.shape_cast %102 : vector<1x8x128xf32> to vector<8x128xf32>
    %cst_13 = arith.constant dense<0.000000e+00> : vector<8x128xf32>
    %104 = tpu.matmul %101, %36, %cst_13 {dimension_numbers = #tpu.dot_dimension_numbers<[1], [0], [0], [1], [0, 0, 1, 1], [], []>} : vector<8x32xf32>, vector<32x128xf32>, vector<8x128xf32> -> vector<8x128xf32>
    %105 = arith.addf %103, %104 : vector<8x128xf32>
    %106 = arith.negf %105 : vector<8x128xf32>
    %107 = math.exp %106 : vector<8x128xf32>
    %cst_14 = arith.constant 1.000000e+00 : f32
    %108 = vector.broadcast %cst_14 : f32 to vector<8x128xf32>
    %109 = arith.addf %108, %107 : vector<8x128xf32>
    %110 = arith.divf %108, %109 : vector<8x128xf32>
    %111 = math.tanh %105 : vector<8x128xf32>
    %112 = arith.select %41, %111, %110 : vector<8x128xi1>, vector<8x128xf32>
    %113 = vector.extract_strided_slice %112 {offsets = [0, 0], sizes = [8, 32], strides = [1, 1]} : vector<8x128xf32> to vector<8x32xf32>
    %114 = vector.extract_strided_slice %112 {offsets = [0, 32], sizes = [8, 32], strides = [1, 1]} : vector<8x128xf32> to vector<8x32xf32>
    %115 = vector.extract_strided_slice %112 {offsets = [0, 64], sizes = [8, 32], strides = [1, 1]} : vector<8x128xf32> to vector<8x32xf32>
    %116 = vector.extract_strided_slice %112 {offsets = [0, 96], sizes = [8, 32], strides = [1, 1]} : vector<8x128xf32> to vector<8x32xf32>
    %117 = arith.mulf %114, %99 : vector<8x32xf32>
    %118 = arith.mulf %113, %116 : vector<8x32xf32>
    %119 = arith.addf %117, %118 : vector<8x32xf32>
    %120 = math.tanh %119 : vector<8x32xf32>
    %121 = arith.mulf %115, %120 : vector<8x32xf32>
    %122 = vector.extract_strided_slice %35 {offsets = [4, 0, 0], sizes = [1, 8, 128], strides = [1, 1, 1]} : vector<8x8x128xf32> to vector<1x8x128xf32>
    %123 = vector.shape_cast %122 : vector<1x8x128xf32> to vector<8x128xf32>
    %cst_15 = arith.constant dense<0.000000e+00> : vector<8x128xf32>
    %124 = tpu.matmul %121, %36, %cst_15 {dimension_numbers = #tpu.dot_dimension_numbers<[1], [0], [0], [1], [0, 0, 1, 1], [], []>} : vector<8x32xf32>, vector<32x128xf32>, vector<8x128xf32> -> vector<8x128xf32>
    %125 = arith.addf %123, %124 : vector<8x128xf32>
    %126 = arith.negf %125 : vector<8x128xf32>
    %127 = math.exp %126 : vector<8x128xf32>
    %cst_16 = arith.constant 1.000000e+00 : f32
    %128 = vector.broadcast %cst_16 : f32 to vector<8x128xf32>
    %129 = arith.addf %128, %127 : vector<8x128xf32>
    %130 = arith.divf %128, %129 : vector<8x128xf32>
    %131 = math.tanh %125 : vector<8x128xf32>
    %132 = arith.select %41, %131, %130 : vector<8x128xi1>, vector<8x128xf32>
    %133 = vector.extract_strided_slice %132 {offsets = [0, 0], sizes = [8, 32], strides = [1, 1]} : vector<8x128xf32> to vector<8x32xf32>
    %134 = vector.extract_strided_slice %132 {offsets = [0, 32], sizes = [8, 32], strides = [1, 1]} : vector<8x128xf32> to vector<8x32xf32>
    %135 = vector.extract_strided_slice %132 {offsets = [0, 64], sizes = [8, 32], strides = [1, 1]} : vector<8x128xf32> to vector<8x32xf32>
    %136 = vector.extract_strided_slice %132 {offsets = [0, 96], sizes = [8, 32], strides = [1, 1]} : vector<8x128xf32> to vector<8x32xf32>
    %137 = arith.mulf %134, %119 : vector<8x32xf32>
    %138 = arith.mulf %133, %136 : vector<8x32xf32>
    %139 = arith.addf %137, %138 : vector<8x32xf32>
    %140 = math.tanh %139 : vector<8x32xf32>
    %141 = arith.mulf %135, %140 : vector<8x32xf32>
    %142 = vector.extract_strided_slice %35 {offsets = [5, 0, 0], sizes = [1, 8, 128], strides = [1, 1, 1]} : vector<8x8x128xf32> to vector<1x8x128xf32>
    %143 = vector.shape_cast %142 : vector<1x8x128xf32> to vector<8x128xf32>
    %cst_17 = arith.constant dense<0.000000e+00> : vector<8x128xf32>
    %144 = tpu.matmul %141, %36, %cst_17 {dimension_numbers = #tpu.dot_dimension_numbers<[1], [0], [0], [1], [0, 0, 1, 1], [], []>} : vector<8x32xf32>, vector<32x128xf32>, vector<8x128xf32> -> vector<8x128xf32>
    %145 = arith.addf %143, %144 : vector<8x128xf32>
    %146 = arith.negf %145 : vector<8x128xf32>
    %147 = math.exp %146 : vector<8x128xf32>
    %cst_18 = arith.constant 1.000000e+00 : f32
    %148 = vector.broadcast %cst_18 : f32 to vector<8x128xf32>
    %149 = arith.addf %148, %147 : vector<8x128xf32>
    %150 = arith.divf %148, %149 : vector<8x128xf32>
    %151 = math.tanh %145 : vector<8x128xf32>
    %152 = arith.select %41, %151, %150 : vector<8x128xi1>, vector<8x128xf32>
    %153 = vector.extract_strided_slice %152 {offsets = [0, 0], sizes = [8, 32], strides = [1, 1]} : vector<8x128xf32> to vector<8x32xf32>
    %154 = vector.extract_strided_slice %152 {offsets = [0, 32], sizes = [8, 32], strides = [1, 1]} : vector<8x128xf32> to vector<8x32xf32>
    %155 = vector.extract_strided_slice %152 {offsets = [0, 64], sizes = [8, 32], strides = [1, 1]} : vector<8x128xf32> to vector<8x32xf32>
    %156 = vector.extract_strided_slice %152 {offsets = [0, 96], sizes = [8, 32], strides = [1, 1]} : vector<8x128xf32> to vector<8x32xf32>
    %157 = arith.mulf %154, %139 : vector<8x32xf32>
    %158 = arith.mulf %153, %156 : vector<8x32xf32>
    %159 = arith.addf %157, %158 : vector<8x32xf32>
    %160 = math.tanh %159 : vector<8x32xf32>
    %161 = arith.mulf %155, %160 : vector<8x32xf32>
    %162 = vector.extract_strided_slice %35 {offsets = [6, 0, 0], sizes = [1, 8, 128], strides = [1, 1, 1]} : vector<8x8x128xf32> to vector<1x8x128xf32>
    %163 = vector.shape_cast %162 : vector<1x8x128xf32> to vector<8x128xf32>
    %cst_19 = arith.constant dense<0.000000e+00> : vector<8x128xf32>
    %164 = tpu.matmul %161, %36, %cst_19 {dimension_numbers = #tpu.dot_dimension_numbers<[1], [0], [0], [1], [0, 0, 1, 1], [], []>} : vector<8x32xf32>, vector<32x128xf32>, vector<8x128xf32> -> vector<8x128xf32>
    %165 = arith.addf %163, %164 : vector<8x128xf32>
    %166 = arith.negf %165 : vector<8x128xf32>
    %167 = math.exp %166 : vector<8x128xf32>
    %cst_20 = arith.constant 1.000000e+00 : f32
    %168 = vector.broadcast %cst_20 : f32 to vector<8x128xf32>
    %169 = arith.addf %168, %167 : vector<8x128xf32>
    %170 = arith.divf %168, %169 : vector<8x128xf32>
    %171 = math.tanh %165 : vector<8x128xf32>
    %172 = arith.select %41, %171, %170 : vector<8x128xi1>, vector<8x128xf32>
    %173 = vector.extract_strided_slice %172 {offsets = [0, 0], sizes = [8, 32], strides = [1, 1]} : vector<8x128xf32> to vector<8x32xf32>
    %174 = vector.extract_strided_slice %172 {offsets = [0, 32], sizes = [8, 32], strides = [1, 1]} : vector<8x128xf32> to vector<8x32xf32>
    %175 = vector.extract_strided_slice %172 {offsets = [0, 64], sizes = [8, 32], strides = [1, 1]} : vector<8x128xf32> to vector<8x32xf32>
    %176 = vector.extract_strided_slice %172 {offsets = [0, 96], sizes = [8, 32], strides = [1, 1]} : vector<8x128xf32> to vector<8x32xf32>
    %177 = arith.mulf %174, %159 : vector<8x32xf32>
    %178 = arith.mulf %173, %176 : vector<8x32xf32>
    %179 = arith.addf %177, %178 : vector<8x32xf32>
    %180 = math.tanh %179 : vector<8x32xf32>
    %181 = arith.mulf %175, %180 : vector<8x32xf32>
    %182 = vector.extract_strided_slice %35 {offsets = [7, 0, 0], sizes = [1, 8, 128], strides = [1, 1, 1]} : vector<8x8x128xf32> to vector<1x8x128xf32>
    %183 = vector.shape_cast %182 : vector<1x8x128xf32> to vector<8x128xf32>
    %cst_21 = arith.constant dense<0.000000e+00> : vector<8x128xf32>
    %184 = tpu.matmul %181, %36, %cst_21 {dimension_numbers = #tpu.dot_dimension_numbers<[1], [0], [0], [1], [0, 0, 1, 1], [], []>} : vector<8x32xf32>, vector<32x128xf32>, vector<8x128xf32> -> vector<8x128xf32>
    %185 = arith.addf %183, %184 : vector<8x128xf32>
    %186 = arith.negf %185 : vector<8x128xf32>
    %187 = math.exp %186 : vector<8x128xf32>
    %cst_22 = arith.constant 1.000000e+00 : f32
    %188 = vector.broadcast %cst_22 : f32 to vector<8x128xf32>
    %189 = arith.addf %188, %187 : vector<8x128xf32>
    %190 = arith.divf %188, %189 : vector<8x128xf32>
    %191 = math.tanh %185 : vector<8x128xf32>
    %192 = arith.select %41, %191, %190 : vector<8x128xi1>, vector<8x128xf32>
    %193 = vector.extract_strided_slice %192 {offsets = [0, 0], sizes = [8, 32], strides = [1, 1]} : vector<8x128xf32> to vector<8x32xf32>
    %194 = vector.extract_strided_slice %192 {offsets = [0, 32], sizes = [8, 32], strides = [1, 1]} : vector<8x128xf32> to vector<8x32xf32>
    %195 = vector.extract_strided_slice %192 {offsets = [0, 64], sizes = [8, 32], strides = [1, 1]} : vector<8x128xf32> to vector<8x32xf32>
    %196 = vector.extract_strided_slice %192 {offsets = [0, 96], sizes = [8, 32], strides = [1, 1]} : vector<8x128xf32> to vector<8x32xf32>
    %197 = arith.mulf %194, %179 : vector<8x32xf32>
    %198 = arith.mulf %193, %196 : vector<8x32xf32>
    %199 = arith.addf %197, %198 : vector<8x32xf32>
    %200 = math.tanh %199 : vector<8x32xf32>
    %201 = arith.mulf %195, %200 : vector<8x32xf32>
    %c0_23 = arith.constant 0 : index
    %c0_24 = arith.constant 0 : index
    %202 = vector.load %arg4[%c0_23, %c0_24] : memref<1x128xf32, #tpu.memory_space<vmem>>, vector<1x128xf32>
    %203 = vector.extract_strided_slice %202 {offsets = [0, 0], sizes = [1, 32], strides = [1, 1]} : vector<1x128xf32> to vector<1x32xf32>
    %204 = vector.broadcast %203 : vector<1x32xf32> to vector<8x32xf32>
    %205 = arith.mulf %201, %204 : vector<8x32xf32>
    %cst_25 = arith.constant dense<0.000000e+00> : vector<8xf32>
    %206 = vector.multi_reduction <add>, %205, %cst_25 [1] : vector<8x32xf32> to vector<8xf32>
    %207 = vector.shape_cast %206 : vector<8xf32> to vector<8x1xf32>
    %208 = vector.extract_strided_slice %202 {offsets = [0, 32], sizes = [1, 1], strides = [1, 1]} : vector<1x128xf32> to vector<1x1xf32>
    %209 = vector.broadcast %208 : vector<1x1xf32> to vector<8x1xf32>
    %210 = arith.addf %207, %209 : vector<8x1xf32>
    %c0_26 = arith.constant 0 : index
    %c0_27 = arith.constant 0 : index
    %211 = vector.load %arg5[%c0_26, %c0_27] : memref<8x1xf32, #tpu.memory_space<vmem>>, vector<8x1xf32>
    tpu.vector_store %arg5[%c0_26, %c0_27], %210 {strides = array<i32>} : memref<8x1xf32, #tpu.memory_space<vmem>>, vector<8x1xf32>,
    return
  }
  func.func @transform_0(%arg0: i32) -> (i32, i32, i32) {
    %c0_i32 = arith.constant 0 : i32
    %c0_i32_0 = arith.constant 0 : i32
    %c0_i32_1 = arith.constant 0 : i32
    return %c0_i32, %arg0, %c0_i32_0 : i32, i32, i32
  }
  func.func @transform_1(%arg0: i32) -> (i32, i32) {
    %c0_i32 = arith.constant 0 : i32
    %c0_i32_0 = arith.constant 0 : i32
    %c0_i32_1 = arith.constant 0 : i32
    return %c0_i32, %c0_i32_0 : i32, i32
  }
  func.func @transform_2(%arg0: i32) -> (i32, i32) {
    %c0_i32 = arith.constant 0 : i32
    %c0_i32_0 = arith.constant 0 : i32
    %c0_i32_1 = arith.constant 0 : i32
    return %c0_i32, %c0_i32_0 : i32, i32
  }
  func.func @transform_3(%arg0: i32) -> (i32, i32) {
    %c0_i32 = arith.constant 0 : i32
    %c0_i32_0 = arith.constant 0 : i32
    %c0_i32_1 = arith.constant 0 : i32
    return %c0_i32, %c0_i32_0 : i32, i32
  }
  func.func @transform_4(%arg0: i32) -> (i32, i32) {
    %c0_i32 = arith.constant 0 : i32
    %c0_i32_0 = arith.constant 0 : i32
    return %arg0, %c0_i32 : i32, i32
  }
}

</mosaic_0001>

<llo_original>
// kernel: tpu_custom_call.1
$region0: #{tpu_custom_call.1}
  #allocation0 [shape = 'u32[]', space=smem, size = 0x4, offset = 0x4, fixed_abs, tag = 'smem constant byte address 0x4 - core index']
  #allocation1 [shape = 'u32[72,128]{1,0:T(1,128)}', space=vmem, size = 0x9000, scoped, tag = 'internal scratch']
  %s0 = inlined_call_operand.vmem [shape: f32[8,8,5], index: 0, kind: input, shape index: {}]
  %s1 = inlined_call_operand.vmem [shape: f32[5,128], index: 1, kind: input, shape index: {}]
  %s2 = inlined_call_operand.vmem [shape: f32[32,128], index: 2, kind: input, shape index: {}]
  %s3 = inlined_call_operand.vmem [shape: f32[1,128], index: 3, kind: input, shape index: {}]
  %s4 = inlined_call_operand.vmem [shape: f32[8,1], index: 4, kind: output, shape index: {}]
  %s5 = sld [smem:[#allocation0]]
  $region26: #{tpu_custom_call.1} parent=0
    _
  %s7 = ssub.s32 1, %s5
  %s8 = scalar_select 0, %s7, %s5
  // Predicated region
  $region2: #{tpu_custom_call.1} parent=0 // pred_check
    _
  $region3: #{tpu_custom_call.1} parent=0 // pred_check_branch
    %10 = sbr.rel (0) target = $region5
  $region4: #{tpu_custom_call.1} parent=0 // pred_region
    _
  $region5: #{tpu_custom_call.1} parent=0 // pred_fallthru
    _
  // Predicated region
  $region6: #{tpu_custom_call.1} parent=0 // pred_check
    _
  $region7: #{tpu_custom_call.1} parent=0 // pred_check_branch
    %12 = sbr.rel (0) target = $region9
  $region8: #{tpu_custom_call.1} parent=0 // pred_region
    _
  $region9: #{tpu_custom_call.1} parent=0 // pred_fallthru
    _
  // Predicated region
  $region10: #{tpu_custom_call.1} parent=0 // pred_check
    _
  $region11: #{tpu_custom_call.1} parent=0 // pred_check_branch
    %14 = sbr.rel (0) target = $region13
  $region12: #{tpu_custom_call.1} parent=0 // pred_region
    _
  $region13: #{tpu_custom_call.1} parent=0 // pred_fallthru
    _
  // Predicated region
  $region14: #{tpu_custom_call.1} parent=0 // pred_check
    _
  $region15: #{tpu_custom_call.1} parent=0 // pred_check_branch
    %16 = sbr.rel (0) target = $region17
  $region16: #{tpu_custom_call.1} parent=0 // pred_region
    _
  $region17: #{tpu_custom_call.1} parent=0 // pred_fallthru
    _
  %v17 = vld [vmem:[%s0] sm:$0xff]
  %v18 = vld [vmem:[%s0 + $0x8] sm:$0xff]
  %v19 = vld [vmem:[%s0 + $0x10] sm:$0xff]
  %v20 = vld [vmem:[%s0 + $0x18] sm:$0xff]
  %v21 = vld [vmem:[%s0 + $0x20] sm:$0xff]
  %v22 = vld [vmem:[%s0 + $0x28] sm:$0xff]
  %v23 = vld [vmem:[%s0 + $0x30] sm:$0xff]
  %v24 = vld [vmem:[%s0 + $0x38] sm:$0xff]
  %v25 = vld [vmem:[%s1] sm:$0x1f]
  %27 = vset.pattern.permute.xlu0 0
  %28 = vperm.xlu0 %27, %v17
  %v29 = vpop.permute.xlu0 %28
  %32 = vset.pattern.permute.xlu0 0
  %33 = vperm.xlu0 %32, %v18
  %v34 = vpop.permute.xlu0 %33
  %37 = vset.pattern.permute.xlu0 0
  %38 = vperm.xlu0 %37, %v19
  %v39 = vpop.permute.xlu0 %38
  %42 = vset.pattern.permute.xlu0 0
  %43 = vperm.xlu0 %42, %v20
  %v44 = vpop.permute.xlu0 %43
  %47 = vset.pattern.permute.xlu0 0
  %48 = vperm.xlu0 %47, %v21
  %v49 = vpop.permute.xlu0 %48
  %52 = vset.pattern.permute.xlu0 0
  %53 = vperm.xlu0 %52, %v22
  %v54 = vpop.permute.xlu0 %53
  %57 = vset.pattern.permute.xlu0 0
  %58 = vperm.xlu0 %57, %v23
  %v59 = vpop.permute.xlu0 %58
  %62 = vset.pattern.permute.xlu0 0
  %63 = vperm.xlu0 %62, %v24
  %v64 = vpop.permute.xlu0 %63
  %v66 = vperm.slane %v25, 0
  %v67 = vmul.f32 %v29, %v66
  %v68 = vmul.f32 %v34, %v66
  %v69 = vmul.f32 %v39, %v66
  %v70 = vmul.f32 %v44, %v66
  %v71 = vmul.f32 %v49, %v66
  %v72 = vmul.f32 %v54, %v66
  %v73 = vmul.f32 %v59, %v66
  %v74 = vmul.f32 %v64, %v66
  %75 = vset.pattern.permute.xlu0 1
  %76 = vperm.xlu0 %75, %v17
  %v77 = vpop.permute.xlu0 %76
  %79 = vset.pattern.permute.xlu0 1
  %80 = vperm.xlu0 %79, %v18
  %v81 = vpop.permute.xlu0 %80
  %83 = vset.pattern.permute.xlu0 1
  %84 = vperm.xlu0 %83, %v19
  %v85 = vpop.permute.xlu0 %84
  %87 = vset.pattern.permute.xlu0 1
  %88 = vperm.xlu0 %87, %v20
  %v89 = vpop.permute.xlu0 %88
  %91 = vset.pattern.permute.xlu0 1
  %92 = vperm.xlu0 %91, %v21
  %v93 = vpop.permute.xlu0 %92
  %95 = vset.pattern.permute.xlu0 1
  %96 = vperm.xlu0 %95, %v22
  %v97 = vpop.permute.xlu0 %96
  %99 = vset.pattern.permute.xlu0 1
  %100 = vperm.xlu0 %99, %v23
  %v101 = vpop.permute.xlu0 %100
  %103 = vset.pattern.permute.xlu0 1
  %104 = vperm.xlu0 %103, %v24
  %v105 = vpop.permute.xlu0 %104
  %v107 = vperm.slane %v25, 1
  %v108 = vmul.f32 %v77, %v107
  %v109 = vmul.f32 %v81, %v107
  %v110 = vmul.f32 %v85, %v107
  %v111 = vmul.f32 %v89, %v107
  %v112 = vmul.f32 %v93, %v107
  %v113 = vmul.f32 %v97, %v107
  %v114 = vmul.f32 %v101, %v107
  %v115 = vmul.f32 %v105, %v107
  %v116 = vadd.f32 %v67, %v108
  %v117 = vadd.f32 %v68, %v109
  %v118 = vadd.f32 %v69, %v110
  %v119 = vadd.f32 %v70, %v111
  %v120 = vadd.f32 %v71, %v112
  %v121 = vadd.f32 %v72, %v113
  %v122 = vadd.f32 %v73, %v114
  %v123 = vadd.f32 %v74, %v115
  %124 = vset.pattern.permute.xlu0 2
  %125 = vperm.xlu0 %124, %v17
  %v126 = vpop.permute.xlu0 %125
  %128 = vset.pattern.permute.xlu0 2
  %129 = vperm.xlu0 %128, %v18
  %v130 = vpop.permute.xlu0 %129
  %132 = vset.pattern.permute.xlu0 2
  %133 = vperm.xlu0 %132, %v19
  %v134 = vpop.permute.xlu0 %133
  %136 = vset.pattern.permute.xlu0 2
  %137 = vperm.xlu0 %136, %v20
  %v138 = vpop.permute.xlu0 %137
  %140 = vset.pattern.permute.xlu0 2
  %141 = vperm.xlu0 %140, %v21
  %v142 = vpop.permute.xlu0 %141
  %144 = vset.pattern.permute.xlu0 2
  %145 = vperm.xlu0 %144, %v22
  %v146 = vpop.permute.xlu0 %145
  %148 = vset.pattern.permute.xlu0 2
  %149 = vperm.xlu0 %148, %v23
  %v150 = vpop.permute.xlu0 %149
  %152 = vset.pattern.permute.xlu0 2
  %153 = vperm.xlu0 %152, %v24
  %v154 = vpop.permute.xlu0 %153
  %v156 = vperm.slane %v25, 2
  %v157 = vmul.f32 %v126, %v156
  %v158 = vmul.f32 %v130, %v156
  %v159 = vmul.f32 %v134, %v156
  %v160 = vmul.f32 %v138, %v156
  %v161 = vmul.f32 %v142, %v156
  %v162 = vmul.f32 %v146, %v156
  %v163 = vmul.f32 %v150, %v156
  %v164 = vmul.f32 %v154, %v156
  %v165 = vadd.f32 %v116, %v157
  %v166 = vadd.f32 %v117, %v158
  %v167 = vadd.f32 %v118, %v159
  %v168 = vadd.f32 %v119, %v160
  %v169 = vadd.f32 %v120, %v161
  %v170 = vadd.f32 %v121, %v162
  %v171 = vadd.f32 %v122, %v163
  %v172 = vadd.f32 %v123, %v164
  %173 = vset.pattern.permute.xlu0 3
  %174 = vperm.xlu0 %173, %v17
  %v175 = vpop.permute.xlu0 %174
  %177 = vset.pattern.permute.xlu0 3
  %178 = vperm.xlu0 %177, %v18
  %v179 = vpop.permute.xlu0 %178
  %181 = vset.pattern.permute.xlu0 3
  %182 = vperm.xlu0 %181, %v19
  %v183 = vpop.permute.xlu0 %182
  %185 = vset.pattern.permute.xlu0 3
  %186 = vperm.xlu0 %185, %v20
  %v187 = vpop.permute.xlu0 %186
  %189 = vset.pattern.permute.xlu0 3
  %190 = vperm.xlu0 %189, %v21
  %v191 = vpop.permute.xlu0 %190
  %193 = vset.pattern.permute.xlu0 3
  %194 = vperm.xlu0 %193, %v22
  %v195 = vpop.permute.xlu0 %194
  %197 = vset.pattern.permute.xlu0 3
  %198 = vperm.xlu0 %197, %v23
  %v199 = vpop.permute.xlu0 %198
  %201 = vset.pattern.permute.xlu0 3
  %202 = vperm.xlu0 %201, %v24
  %v203 = vpop.permute.xlu0 %202
  %v205 = vperm.slane %v25, 3
  %v206 = vmul.f32 %v175, %v205
  %v207 = vmul.f32 %v179, %v205
  %v208 = vmul.f32 %v183, %v205
  %v209 = vmul.f32 %v187, %v205
  %v210 = vmul.f32 %v191, %v205
  %v211 = vmul.f32 %v195, %v205
  %v212 = vmul.f32 %v199, %v205
  %v213 = vmul.f32 %v203, %v205
  %v214 = vadd.f32 %v165, %v206
  %v215 = vadd.f32 %v166, %v207
  %v216 = vadd.f32 %v167, %v208
  %v217 = vadd.f32 %v168, %v209
  %v218 = vadd.f32 %v169, %v210
  %v219 = vadd.f32 %v170, %v211
  %v220 = vadd.f32 %v171, %v212
  %v221 = vadd.f32 %v172, %v213
  %222 = vset.pattern.permute.xlu0 4
  %223 = vperm.xlu0 %222, %v17
  %v224 = vpop.permute.xlu0 %223
  %226 = vset.pattern.permute.xlu0 4
  %227 = vperm.xlu0 %226, %v18
  %v228 = vpop.permute.xlu0 %227
  %230 = vset.pattern.permute.xlu0 4
  %231 = vperm.xlu0 %230, %v19
  %v232 = vpop.permute.xlu0 %231
  %234 = vset.pattern.permute.xlu0 4
  %235 = vperm.xlu0 %234, %v20
  %v236 = vpop.permute.xlu0 %235
  %238 = vset.pattern.permute.xlu0 4
  %239 = vperm.xlu0 %238, %v21
  %v240 = vpop.permute.xlu0 %239
  %242 = vset.pattern.permute.xlu0 4
  %243 = vperm.xlu0 %242, %v22
  %v244 = vpop.permute.xlu0 %243
  %246 = vset.pattern.permute.xlu0 4
  %247 = vperm.xlu0 %246, %v23
  %v248 = vpop.permute.xlu0 %247
  %250 = vset.pattern.permute.xlu0 4
  %251 = vperm.xlu0 %250, %v24
  %v252 = vpop.permute.xlu0 %251
  %v254 = vperm.slane %v25, 4
  %v255 = vmul.f32 %v224, %v254
  %v256 = vmul.f32 %v228, %v254
  %v257 = vmul.f32 %v232, %v254
  %v258 = vmul.f32 %v236, %v254
  %v259 = vmul.f32 %v240, %v254
  %v260 = vmul.f32 %v244, %v254
  %v261 = vmul.f32 %v248, %v254
  %v262 = vmul.f32 %v252, %v254
  %v263 = vadd.f32 %v214, %v255
  %v264 = vadd.f32 %v215, %v256
  %v265 = vadd.f32 %v216, %v257
  %v266 = vadd.f32 %v217, %v258
  %v267 = vadd.f32 %v218, %v259
  %v268 = vadd.f32 %v219, %v260
  %v269 = vadd.f32 %v220, %v261
  %v270 = vadd.f32 %v221, %v262
  %v271 = vld [vmem:[%s2] sm:$0xff]
  %v272 = vld [vmem:[%s2 + $0x8] sm:$0xff]
  %v273 = vld [vmem:[%s2 + $0x10] sm:$0xff]
  %v274 = vld [vmem:[%s2 + $0x18] sm:$0xff]
  %v275 = vlaneseq
  %v276 = vand.u32 %v275, 127
  %vm277 = vcmp.ge.s32.totalorder %v276, 96
  %vm278 = vcmask 261120
  %v280 = vsel %vm278, 0.0, 0
  %282 = vmatpush.msra.mxu0 0.0
  %283 = vmatpush.msra.mxu0 0.0
  %284 = vmatpush.msra.mxu0 0.0
  %285 = vmatpush.msra.mxu0 0.0
  %286 = vmatpush.msra.mxu0 0.0
  %287 = vmatpush.msra.mxu0 0.0
  %288 = vmatpush.msra.mxu0 0.0
  %289 = vmatpush.msra.mxu0 0.0
  %290 = vmatpush.msra.mxu0 0.0
  %291 = vmatpush.msra.mxu0 0.0
  %292 = vmatpush.msra.mxu0 0.0
  %293 = vmatpush.msra.mxu0 0.0
  %294 = vmatpush.msra.mxu0 %v274
  %295 = vmatpush.msra.mxu0 %v273
  %296 = vmatpush.msra.mxu0 %v272
  %297 = vmatpush.msra.mxu0 %v271
  %298 = vmatmul.f32.gmra.mxu0 %v280
  %v299 = vpop.f32.mrf.mxu0
  %v300 = vadd.f32 0.0, %v299
  %301 = vdwg.mxu0
  %v302 = vadd.f32 %v263, %v300
  %v303 = vxor.u32 %v302, 2147483648
  %v304 = vmul.f32 %v303, 1.442695
  %v305 = vpow.pop %v304
  %v306 = vadd.f32 %v305, 1.0
  %v307 = vrcp.pop %v306
  %v308 = vmul.f32 %v306, %v307
  %v309 = vsub.f32 1.0, %v308
  %v310 = vmul.f32 %v307, %v309
  %v311 = vadd.f32 %v307, %v310
  %vm312 = vweird.f32 %v306
  %vm313 = vweird.f32 %v307
  %vm314 = vmor %vm312, %vm313
  %v315 = vsel %vm314, %v307, %v311
  %v316 = vand.u32 2147483647, %v306
  %vm317 = vcmp.eq.f32.partialorder %v316, 8.507059e+37
  %v318 = vand.u32 %v306, 2147483648
  %v319 = vor.u32 1.1754944e-38, %v318
  %v320 = vsel %vm317, %v319, %v315
  %v321 = vmul.f32 1.0, %v320
  %v322 = vtanh.pop %v302
  %v323 = vsel %vm277, %v322, %v321
  %v324 = vmul.f32 %v323, 0.0
  %326 = vrot.lane.b32.xlu0 %v323, 32
  %v327 = vpop.permute.xlu0 %326
  %v329 = vmul.f32 %v323, %v327
  %331 = vrot.lane.b32.xlu0 %v329, 32
  %v332 = vpop.permute.xlu0 %331
  %v334 = vadd.f32 %v324, %v332
  %v335 = vtanh.pop %v334
  %337 = vrot.lane.b32.xlu0 %v335, 32
  %v338 = vpop.permute.xlu0 %337
  %v340 = vmul.f32 %v323, %v338
  %342 = vrot.lane.b32.xlu0 %v340, 64
  %v343 = vpop.permute.xlu0 %342
  %v344 = vsel %vm278, %v343, 0
  %346 = vmatpush.msra.mxu0 0.0
  %347 = vmatpush.msra.mxu0 0.0
  %348 = vmatpush.msra.mxu0 0.0
  %349 = vmatpush.msra.mxu0 0.0
  %350 = vmatpush.msra.mxu0 0.0
  %351 = vmatpush.msra.mxu0 0.0
  %352 = vmatpush.msra.mxu0 0.0
  %353 = vmatpush.msra.mxu0 0.0
  %354 = vmatpush.msra.mxu0 0.0
  %355 = vmatpush.msra.mxu0 0.0
  %356 = vmatpush.msra.mxu0 0.0
  %357 = vmatpush.msra.mxu0 0.0
  %358 = vmatpush.msra.mxu0 %v274
  %359 = vmatpush.msra.mxu0 %v273
  %360 = vmatpush.msra.mxu0 %v272
  %361 = vmatpush.msra.mxu0 %v271
  %362 = vmatmul.f32.gmra.mxu0 %v344
  %v363 = vpop.f32.mrf.mxu0
  %v364 = vadd.f32 0.0, %v363
  %365 = vdwg.mxu0
  %v366 = vadd.f32 %v264, %v364
  %v367 = vxor.u32 %v366, 2147483648
  %v368 = vmul.f32 %v367, 1.442695
  %v369 = vpow.pop %v368
  %v370 = vadd.f32 %v369, 1.0
  %v371 = vrcp.pop %v370
  %v372 = vmul.f32 %v370, %v371
  %v373 = vsub.f32 1.0, %v372
  %v374 = vmul.f32 %v371, %v373
  %v375 = vadd.f32 %v371, %v374
  %vm376 = vweird.f32 %v370
  %vm377 = vweird.f32 %v371
  %vm378 = vmor %vm376, %vm377
  %v379 = vsel %vm378, %v371, %v375
  %v380 = vand.u32 2147483647, %v370
  %vm381 = vcmp.eq.f32.partialorder %v380, 8.507059e+37
  %v382 = vand.u32 %v370, 2147483648
  %v383 = vor.u32 1.1754944e-38, %v382
  %v384 = vsel %vm381, %v383, %v379
  %v385 = vmul.f32 1.0, %v384
  %v386 = vtanh.pop %v366
  %v387 = vsel %vm277, %v386, %v385
  %v388 = vmul.f32 %v387, %v334
  %390 = vrot.lane.b32.xlu0 %v387, 32
  %v391 = vpop.permute.xlu0 %390
  %v393 = vmul.f32 %v387, %v391
  %395 = vrot.lane.b32.xlu0 %v393, 32
  %v396 = vpop.permute.xlu0 %395
  %v398 = vadd.f32 %v388, %v396
  %v399 = vtanh.pop %v398
  %401 = vrot.lane.b32.xlu0 %v399, 32
  %v402 = vpop.permute.xlu0 %401
  %v404 = vmul.f32 %v387, %v402
  %406 = vrot.lane.b32.xlu0 %v404, 64
  %v407 = vpop.permute.xlu0 %406
  %v408 = vsel %vm278, %v407, 0
  %410 = vmatpush.msra.mxu0 0.0
  %411 = vmatpush.msra.mxu0 0.0
  %412 = vmatpush.msra.mxu0 0.0
  %413 = vmatpush.msra.mxu0 0.0
  %414 = vmatpush.msra.mxu0 0.0
  %415 = vmatpush.msra.mxu0 0.0
  %416 = vmatpush.msra.mxu0 0.0
  %417 = vmatpush.msra.mxu0 0.0
  %418 = vmatpush.msra.mxu0 0.0
  %419 = vmatpush.msra.mxu0 0.0
  %420 = vmatpush.msra.mxu0 0.0
  %421 = vmatpush.msra.mxu0 0.0
  %422 = vmatpush.msra.mxu0 %v274
  %423 = vmatpush.msra.mxu0 %v273
  %424 = vmatpush.msra.mxu0 %v272
  %425 = vmatpush.msra.mxu0 %v271
  %426 = vmatmul.f32.gmra.mxu0 %v408
  %v427 = vpop.f32.mrf.mxu0
  %v428 = vadd.f32 0.0, %v427
  %429 = vdwg.mxu0
  %v430 = vadd.f32 %v265, %v428
  %v431 = vxor.u32 %v430, 2147483648
  %v432 = vmul.f32 %v431, 1.442695
  %v433 = vpow.pop %v432
  %v434 = vadd.f32 %v433, 1.0
  %v435 = vrcp.pop %v434
  %v436 = vmul.f32 %v434, %v435
  %v437 = vsub.f32 1.0, %v436
  %v438 = vmul.f32 %v435, %v437
  %v439 = vadd.f32 %v435, %v438
  %vm440 = vweird.f32 %v434
  %vm441 = vweird.f32 %v435
  %vm442 = vmor %vm440, %vm441
  %v443 = vsel %vm442, %v435, %v439
  %v444 = vand.u32 2147483647, %v434
  %vm445 = vcmp.eq.f32.partialorder %v444, 8.507059e+37
  %v446 = vand.u32 %v434, 2147483648
  %v447 = vor.u32 1.1754944e-38, %v446
  %v448 = vsel %vm445, %v447, %v443
  %v449 = vmul.f32 1.0, %v448
  %v450 = vtanh.pop %v430
  %v451 = vsel %vm277, %v450, %v449
  %v452 = vmul.f32 %v451, %v398
  %454 = vrot.lane.b32.xlu0 %v451, 32
  %v455 = vpop.permute.xlu0 %454
  %v457 = vmul.f32 %v451, %v455
  %459 = vrot.lane.b32.xlu0 %v457, 32
  %v460 = vpop.permute.xlu0 %459
  %v462 = vadd.f32 %v452, %v460
  %v463 = vtanh.pop %v462
  %465 = vrot.lane.b32.xlu0 %v463, 32
  %v466 = vpop.permute.xlu0 %465
  %v468 = vmul.f32 %v451, %v466
  %470 = vrot.lane.b32.xlu0 %v468, 64
  %v471 = vpop.permute.xlu0 %470
  %v472 = vsel %vm278, %v471, 0
  %474 = vmatpush.msra.mxu0 0.0
  %475 = vmatpush.msra.mxu0 0.0
  %476 = vmatpush.msra.mxu0 0.0
  %477 = vmatpush.msra.mxu0 0.0
  %478 = vmatpush.msra.mxu0 0.0
  %479 = vmatpush.msra.mxu0 0.0
  %480 = vmatpush.msra.mxu0 0.0
  %481 = vmatpush.msra.mxu0 0.0
  %482 = vmatpush.msra.mxu0 0.0
  %483 = vmatpush.msra.mxu0 0.0
  %484 = vmatpush.msra.mxu0 0.0
  %485 = vmatpush.msra.mxu0 0.0
  %486 = vmatpush.msra.mxu0 %v274
  %487 = vmatpush.msra.mxu0 %v273
  %488 = vmatpush.msra.mxu0 %v272
  %489 = vmatpush.msra.mxu0 %v271
  %490 = vmatmul.f32.gmra.mxu0 %v472
  %v491 = vpop.f32.mrf.mxu0
  %v492 = vadd.f32 0.0, %v491
  %493 = vdwg.mxu0
  %v494 = vadd.f32 %v266, %v492
  %v495 = vxor.u32 %v494, 2147483648
  %v496 = vmul.f32 %v495, 1.442695
  %v497 = vpow.pop %v496
  %v498 = vadd.f32 %v497, 1.0
  %v499 = vrcp.pop %v498
  %v500 = vmul.f32 %v498, %v499
  %v501 = vsub.f32 1.0, %v500
  %v502 = vmul.f32 %v499, %v501
  %v503 = vadd.f32 %v499, %v502
  %vm504 = vweird.f32 %v498
  %vm505 = vweird.f32 %v499
  %vm506 = vmor %vm504, %vm505
  %v507 = vsel %vm506, %v499, %v503
  %v508 = vand.u32 2147483647, %v498
  %vm509 = vcmp.eq.f32.partialorder %v508, 8.507059e+37
  %v510 = vand.u32 %v498, 2147483648
  %v511 = vor.u32 1.1754944e-38, %v510
  %v512 = vsel %vm509, %v511, %v507
  %v513 = vmul.f32 1.0, %v512
  %v514 = vtanh.pop %v494
  %v515 = vsel %vm277, %v514, %v513
  %v516 = vmul.f32 %v515, %v462
  %518 = vrot.lane.b32.xlu0 %v515, 32
  %v519 = vpop.permute.xlu0 %518
  %v521 = vmul.f32 %v515, %v519
  %523 = vrot.lane.b32.xlu0 %v521, 32
  %v524 = vpop.permute.xlu0 %523
  %v526 = vadd.f32 %v516, %v524
  %v527 = vtanh.pop %v526
  %529 = vrot.lane.b32.xlu0 %v527, 32
  %v530 = vpop.permute.xlu0 %529
  %v532 = vmul.f32 %v515, %v530
  %534 = vrot.lane.b32.xlu0 %v532, 64
  %v535 = vpop.permute.xlu0 %534
  %v536 = vsel %vm278, %v535, 0
  %538 = vmatpush.msra.mxu0 0.0
  %539 = vmatpush.msra.mxu0 0.0
  %540 = vmatpush.msra.mxu0 0.0
  %541 = vmatpush.msra.mxu0 0.0
  %542 = vmatpush.msra.mxu0 0.0
  %543 = vmatpush.msra.mxu0 0.0
  %544 = vmatpush.msra.mxu0 0.0
  %545 = vmatpush.msra.mxu0 0.0
  %546 = vmatpush.msra.mxu0 0.0
  %547 = vmatpush.msra.mxu0 0.0
  %548 = vmatpush.msra.mxu0 0.0
  %549 = vmatpush.msra.mxu0 0.0
  %550 = vmatpush.msra.mxu0 %v274
  %551 = vmatpush.msra.mxu0 %v273
  %552 = vmatpush.msra.mxu0 %v272
  %553 = vmatpush.msra.mxu0 %v271
  %554 = vmatmul.f32.gmra.mxu0 %v536
  %v555 = vpop.f32.mrf.mxu0
  %v556 = vadd.f32 0.0, %v555
  %557 = vdwg.mxu0
  %v558 = vadd.f32 %v267, %v556
  %v559 = vxor.u32 %v558, 2147483648
  %v560 = vmul.f32 %v559, 1.442695
  %v561 = vpow.pop %v560
  %v562 = vadd.f32 %v561, 1.0
  %v563 = vrcp.pop %v562
  %v564 = vmul.f32 %v562, %v563
  %v565 = vsub.f32 1.0, %v564
  %v566 = vmul.f32 %v563, %v565
  %v567 = vadd.f32 %v563, %v566
  %vm568 = vweird.f32 %v562
  %vm569 = vweird.f32 %v563
  %vm570 = vmor %vm568, %vm569
  %v571 = vsel %vm570, %v563, %v567
  %v572 = vand.u32 2147483647, %v562
  %vm573 = vcmp.eq.f32.partialorder %v572, 8.507059e+37
  %v574 = vand.u32 %v562, 2147483648
  %v575 = vor.u32 1.1754944e-38, %v574
  %v576 = vsel %vm573, %v575, %v571
  %v577 = vmul.f32 1.0, %v576
  %v578 = vtanh.pop %v558
  %v579 = vsel %vm277, %v578, %v577
  %v580 = vmul.f32 %v579, %v526
  %582 = vrot.lane.b32.xlu0 %v579, 32
  %v583 = vpop.permute.xlu0 %582
  %v585 = vmul.f32 %v579, %v583
  %587 = vrot.lane.b32.xlu0 %v585, 32
  %v588 = vpop.permute.xlu0 %587
  %v590 = vadd.f32 %v580, %v588
  %v591 = vtanh.pop %v590
  %593 = vrot.lane.b32.xlu0 %v591, 32
  %v594 = vpop.permute.xlu0 %593
  %v596 = vmul.f32 %v579, %v594
  %598 = vrot.lane.b32.xlu0 %v596, 64
  %v599 = vpop.permute.xlu0 %598
  %v600 = vsel %vm278, %v599, 0
  %602 = vmatpush.msra.mxu0 0.0
  %603 = vmatpush.msra.mxu0 0.0
  %604 = vmatpush.msra.mxu0 0.0
  %605 = vmatpush.msra.mxu0 0.0
  %606 = vmatpush.msra.mxu0 0.0
  %607 = vmatpush.msra.mxu0 0.0
  %608 = vmatpush.msra.mxu0 0.0
  %609 = vmatpush.msra.mxu0 0.0
  %610 = vmatpush.msra.mxu0 0.0
  %611 = vmatpush.msra.mxu0 0.0
  %612 = vmatpush.msra.mxu0 0.0
  %613 = vmatpush.msra.mxu0 0.0
  %614 = vmatpush.msra.mxu0 %v274
  %615 = vmatpush.msra.mxu0 %v273
  %616 = vmatpush.msra.mxu0 %v272
  %617 = vmatpush.msra.mxu0 %v271
  %618 = vmatmul.f32.gmra.mxu0 %v600
  %v619 = vpop.f32.mrf.mxu0
  %v620 = vadd.f32 0.0, %v619
  %621 = vdwg.mxu0
  %v622 = vadd.f32 %v268, %v620
  %v623 = vxor.u32 %v622, 2147483648
  %v624 = vmul.f32 %v623, 1.442695
  %v625 = vpow.pop %v624
  %v626 = vadd.f32 %v625, 1.0
  %v627 = vrcp.pop %v626
  %v628 = vmul.f32 %v626, %v627
  %v629 = vsub.f32 1.0, %v628
  %v630 = vmul.f32 %v627, %v629
  %v631 = vadd.f32 %v627, %v630
  %vm632 = vweird.f32 %v626
  %vm633 = vweird.f32 %v627
  %vm634 = vmor %vm632, %vm633
  %v635 = vsel %vm634, %v627, %v631
  %v636 = vand.u32 2147483647, %v626
  %vm637 = vcmp.eq.f32.partialorder %v636, 8.507059e+37
  %v638 = vand.u32 %v626, 2147483648
  %v639 = vor.u32 1.1754944e-38, %v638
  %v640 = vsel %vm637, %v639, %v635
  %v641 = vmul.f32 1.0, %v640
  %v642 = vtanh.pop %v622
  %v643 = vsel %vm277, %v642, %v641
  %v644 = vmul.f32 %v643, %v590
  %646 = vrot.lane.b32.xlu0 %v643, 32
  %v647 = vpop.permute.xlu0 %646
  %v649 = vmul.f32 %v643, %v647
  %651 = vrot.lane.b32.xlu0 %v649, 32
  %v652 = vpop.permute.xlu0 %651
  %v654 = vadd.f32 %v644, %v652
  %v655 = vtanh.pop %v654
  %657 = vrot.lane.b32.xlu0 %v655, 32
  %v658 = vpop.permute.xlu0 %657
  %v660 = vmul.f32 %v643, %v658
  %662 = vrot.lane.b32.xlu0 %v660, 64
  %v663 = vpop.permute.xlu0 %662
  %v664 = vsel %vm278, %v663, 0
  %666 = vmatpush.msra.mxu0 0.0
  %667 = vmatpush.msra.mxu0 0.0
  %668 = vmatpush.msra.mxu0 0.0
  %669 = vmatpush.msra.mxu0 0.0
  %670 = vmatpush.msra.mxu0 0.0
  %671 = vmatpush.msra.mxu0 0.0
  %672 = vmatpush.msra.mxu0 0.0
  %673 = vmatpush.msra.mxu0 0.0
  %674 = vmatpush.msra.mxu0 0.0
  %675 = vmatpush.msra.mxu0 0.0
  %676 = vmatpush.msra.mxu0 0.0
  %677 = vmatpush.msra.mxu0 0.0
  %678 = vmatpush.msra.mxu0 %v274
  %679 = vmatpush.msra.mxu0 %v273
  %680 = vmatpush.msra.mxu0 %v272
  %681 = vmatpush.msra.mxu0 %v271
  %682 = vmatmul.f32.gmra.mxu0 %v664
  %v683 = vpop.f32.mrf.mxu0
  %v684 = vadd.f32 0.0, %v683
  %685 = vdwg.mxu0
  %v686 = vadd.f32 %v269, %v684
  %v687 = vxor.u32 %v686, 2147483648
  %v688 = vmul.f32 %v687, 1.442695
  %v689 = vpow.pop %v688
  %v690 = vadd.f32 %v689, 1.0
  %v691 = vrcp.pop %v690
  %v692 = vmul.f32 %v690, %v691
  %v693 = vsub.f32 1.0, %v692
  %v694 = vmul.f32 %v691, %v693
  %v695 = vadd.f32 %v691, %v694
  %vm696 = vweird.f32 %v690
  %vm697 = vweird.f32 %v691
  %vm698 = vmor %vm696, %vm697
  %v699 = vsel %vm698, %v691, %v695
  %v700 = vand.u32 2147483647, %v690
  %vm701 = vcmp.eq.f32.partialorder %v700, 8.507059e+37
  %v702 = vand.u32 %v690, 2147483648
  %v703 = vor.u32 1.1754944e-38, %v702
  %v704 = vsel %vm701, %v703, %v699
  %v705 = vmul.f32 1.0, %v704
  %v706 = vtanh.pop %v686
  %v707 = vsel %vm277, %v706, %v705
  %v708 = vmul.f32 %v707, %v654
  %710 = vrot.lane.b32.xlu0 %v707, 32
  %v711 = vpop.permute.xlu0 %710
  %v713 = vmul.f32 %v707, %v711
  %715 = vrot.lane.b32.xlu0 %v713, 32
  %v716 = vpop.permute.xlu0 %715
  %v718 = vadd.f32 %v708, %v716
  %v719 = vtanh.pop %v718
  %721 = vrot.lane.b32.xlu0 %v719, 32
  %v722 = vpop.permute.xlu0 %721
  %v724 = vmul.f32 %v707, %v722
  %726 = vrot.lane.b32.xlu0 %v724, 64
  %v727 = vpop.permute.xlu0 %726
  %v728 = vsel %vm278, %v727, 0
  %730 = vmatpush.msra.mxu0 0.0
  %731 = vmatpush.msra.mxu0 0.0
  %732 = vmatpush.msra.mxu0 0.0
  %733 = vmatpush.msra.mxu0 0.0
  %734 = vmatpush.msra.mxu0 0.0
  %735 = vmatpush.msra.mxu0 0.0
  %736 = vmatpush.msra.mxu0 0.0
  %737 = vmatpush.msra.mxu0 0.0
  %738 = vmatpush.msra.mxu0 0.0
  %739 = vmatpush.msra.mxu0 0.0
  %740 = vmatpush.msra.mxu0 0.0
  %741 = vmatpush.msra.mxu0 0.0
  %742 = vmatpush.msra.mxu0 %v274
  %743 = vmatpush.msra.mxu0 %v273
  %744 = vmatpush.msra.mxu0 %v272
  %745 = vmatpush.msra.mxu0 %v271
  %746 = vmatmul.f32.gmra.mxu0 %v728
  %v747 = vpop.f32.mrf.mxu0
  %v748 = vadd.f32 0.0, %v747
  %749 = vdwg.mxu0
  %v750 = vadd.f32 %v270, %v748
  %v751 = vxor.u32 %v750, 2147483648
  %v752 = vmul.f32 %v751, 1.442695
  %v753 = vpow.pop %v752
  %v754 = vadd.f32 %v753, 1.0
  %v755 = vrcp.pop %v754
  %v756 = vmul.f32 %v754, %v755
  %v757 = vsub.f32 1.0, %v756
  %v758 = vmul.f32 %v755, %v757
  %v759 = vadd.f32 %v755, %v758
  %vm760 = vweird.f32 %v754
  %vm761 = vweird.f32 %v755
  %vm762 = vmor %vm760, %vm761
  %v763 = vsel %vm762, %v755, %v759
  %v764 = vand.u32 2147483647, %v754
  %vm765 = vcmp.eq.f32.partialorder %v764, 8.507059e+37
  %v766 = vand.u32 %v754, 2147483648
  %v767 = vor.u32 1.1754944e-38, %v766
  %v768 = vsel %vm765, %v767, %v763
  %v769 = vmul.f32 1.0, %v768
  %v770 = vtanh.pop %v750
  %v771 = vsel %vm277, %v770, %v769
  %v772 = vmul.f32 %v771, %v718
  %774 = vrot.lane.b32.xlu0 %v771, 32
  %v775 = vpop.permute.xlu0 %774
  %v777 = vmul.f32 %v771, %v775
  %779 = vrot.lane.b32.xlu0 %v777, 32
  %v780 = vpop.permute.xlu0 %779
  %v782 = vadd.f32 %v772, %v780
  %v783 = vtanh.pop %v782
  %785 = vrot.lane.b32.xlu0 %v783, 32
  %v786 = vpop.permute.xlu0 %785
  %v788 = vmul.f32 %v771, %v786
  %v789 = vld [vmem:[%s3] sm:$0x1]
  %v791 = vperm.slane %v789, 0
  %792 = vrot.lane.b32.xlu0 %v791, 64
  %v793 = vpop.permute.xlu0 %792
  %v795 = vmul.f32 %v788, %v793
  %797 = vrot.lane.b32.xlu0 %v795, 64
  %v798 = vpop.permute.xlu0 %797
  %v800 = vsel %vm278, %v798, 0.0
  %801 = vadd.xlane.f32.xlu0 %v800
  %v802 = vpop.xlane.xlu0 %801
  %v804 = vadd.f32 %v802, %v791
  %806 = vrot.lane.b32.xlu0 %v804, 96
  %v807 = vpop.permute.xlu0 %806
  %vm809 = vcmask 7168
  %810 = vst.msk [vmem:[%s4] sm:$0xff] %vm809, %v807
  // Predicated region
  $region18: #{tpu_custom_call.1} parent=0 // pred_check
    _
  $region19: #{tpu_custom_call.1} parent=0 // pred_check_branch
    %812 = sbr.rel (0) target = $region21
  $region20: #{tpu_custom_call.1} parent=0 // pred_region
    _
  $region21: #{tpu_custom_call.1} parent=0 // pred_fallthru
    _
  // Predicated region
  $region22: #{tpu_custom_call.1} parent=0 // pred_check
    _
  $region23: #{tpu_custom_call.1} parent=0 // pred_check_branch
    %814 = sbr.rel (0) target = $region25
  $region24: #{tpu_custom_call.1} parent=0 // pred_region
    _
  $region25: #{tpu_custom_call.1} parent=0 // pred_fallthru
    _

</llo_original>
